<compile_context>
chip_gen: v7x
topology: tpu7x:2x2x1
jax: 0.10.0
libtpu: 0.0.40
codegen_flags: <defaults>
</compile_context>

<pallas_src>
import jax
import jax.numpy as jnp
from jax import lax
from jax.experimental import pallas as pl
from jax.experimental.pallas import tpu as pltpu

_EPS = 1e-5  # PyTorch BatchNorm1d default


def _dense_critic_kernel(bc_ref,          # SMEM (1,): critic bias
                         seq_ref,         # VMEM (L, B, input_size)
                         lab_ref,         # VMEM (B, label_size)
                         w_lead_ref,      # VMEM (L, input_size, H2)
                         lead_pack_ref,   # VMEM (L, 4, H2): [bias, gamma, beta, alpha]
                         w_label_ref,     # VMEM (label_size, H2)
                         label_pack_ref,  # VMEM (4, H2): [bias, gamma, beta, alpha]
                         wc_ref,          # VMEM (2, H2): [lead half, label half] of critic W
                         out_ref):        # VMEM (B, L)
    lead_n = seq_ref.shape[0]
    bc = bc_ref[0]

    wc = wc_ref[...]                      # (2, H2)
    wc_lead = wc[0:1, :]                  # (1, H2)
    wc_label = wc[1:2, :]                 # (1, H2)

    # ---- label path: encoder + critic contribution + bias, computed ONCE ----
    lp = label_pack_ref[...]              # (4, H2)
    z = jnp.dot(lab_ref[...], w_label_ref[...],
                preferred_element_type=jnp.float32) + lp[0:1, :]
    m = jnp.mean(z, axis=0, keepdims=True)
    v = jnp.mean((z - m) ** 2, axis=0, keepdims=True)          # biased variance
    zn = (z - m) * lax.rsqrt(v + _EPS) * lp[1:2, :] + lp[2:3, :]
    h_lab = jnp.where(zn >= 0, zn, lp[3:4, :] * zn)            # PReLU
    # (B, 1): VPU multiply + lane reduce instead of an N=1 MXU matvec.
    lab_logit = jnp.sum(h_lab * wc_label, axis=-1, keepdims=True) + bc

    # ---- all per-lead Linears as one batched MXU matmul: (L,B,I) @ (L,I,H2) ----
    z = jnp.einsum("lbi,lih->lbh", seq_ref[...], w_lead_ref[...],
                   preferred_element_type=jnp.float32)          # (L, B, H2) f32

    # ---- BN + PReLU vectorized over all leads at once ----
    pk = lead_pack_ref[...]               # (L, 4, H2)
    z = z + pk[:, 0:1, :]                 # Linear bias
    m = jnp.mean(z, axis=1, keepdims=True)                      # batch stats, per lead
    v = jnp.mean((z - m) ** 2, axis=1, keepdims=True)           # biased variance
    zn = (z - m) * lax.rsqrt(v + _EPS) * pk[:, 1:2, :] + pk[:, 2:3, :]
    h = jnp.where(zn >= 0, zn, pk[:, 3:4, :] * zn)              # (L, B, H2)

    # ---- critic tail: lane-reduce per lead, single lane-dense store ----
    cols = [jnp.sum(h[l] * wc_lead, axis=-1, keepdims=True)     # each (B, 1)
            for l in range(lead_n)]                             # static unroll (L small)
    logits = jnp.concatenate(cols, axis=1) + lab_logit          # (B, L)
    out_ref[...] = jax.nn.sigmoid(logits)                       # one full-block store


def dense_critic_forward(sequence, label, params, *, matmul_dtype=jnp.float32):
    """sequence: (B, input_size, lead_n), label: (B, label_size) -> (B, lead_n).

    matmul_dtype=jnp.bfloat16 halves matmul-input DMA bytes and hits the native
    bf16 MXU path on v6e/v7x (accumulation and BN/PReLU stay f32).  Default f32
    matches the f32 reference to 1e-5.
    """
    B, input_size, lead_n = sequence.shape
    H2 = params["w_lead_t"].shape[-1]

    # Lead-major layout for the batched matmul.  Callers that can supply
    # (lead_n, B, input_size) directly should do so and skip this HBM pass.
    seq_t = jnp.transpose(sequence, (2, 0, 1)).astype(matmul_dtype)

    # ---- pack the small parameters (cheap; cacheable by the caller) ----
    a_lead_b = jnp.broadcast_to(params["a_lead"].astype(jnp.float32)[:, None],
                                (lead_n, H2))
    lead_pack = jnp.stack(
        [params["b_lead"], params["gamma_lead"], params["beta_lead"], a_lead_b],
        axis=1).astype(jnp.float32)                              # (L, 4, H2)
    a_label_b = jnp.broadcast_to(jnp.asarray(params["a_label"], jnp.float32), (H2,))
    label_pack = jnp.stack(
        [params["b_label"], params["gamma_label"], params["beta_label"], a_label_b],
        axis=0).astype(jnp.float32)                              # (4, H2)
    wc_pack = params["wc"].reshape(2, H2).astype(jnp.float32)    # [lead half, label half]
    bc = jnp.reshape(params["bc"], (1,)).astype(jnp.float32)     # (1,)

    vmem = pl.BlockSpec(memory_space=pltpu.MemorySpace.VMEM)
    smem = pl.BlockSpec(memory_space=pltpu.MemorySpace.SMEM)

    return pl.pallas_call(
        _dense_critic_kernel,
        out_shape=jax.ShapeDtypeStruct((B, lead_n), jnp.float32),
        in_specs=[smem, vmem, vmem, vmem, vmem, vmem, vmem, vmem],
        out_specs=vmem,
    )(bc,
      seq_t,
      label.astype(matmul_dtype),
      params["w_lead_t"].astype(matmul_dtype),
      lead_pack,
      params["w_label_t"].astype(matmul_dtype),
      label_pack,
      wc_pack)


def dense_critic_reference(sequence, label, params):
    """Pure-JAX reference mirroring the PyTorch forward."""
    def enc(x, w_t, b, g, be, a):
        z = x @ w_t + b
        m = jnp.mean(z, axis=0, keepdims=True)
        v = jnp.mean((z - m) ** 2, axis=0, keepdims=True)
        zn = (z - m) / jnp.sqrt(v + _EPS) * g + be
        return jnp.where(zn >= 0, zn, a * zn)

    H2 = params["w_label_t"].shape[1]
    lead_n = sequence.shape[2]
    wc_lead = params["wc"][0, :H2]
    wc_label = params["wc"][0, H2:]
    h_lab = enc(label, params["w_label_t"], params["b_label"],
                params["gamma_label"], params["beta_label"], params["a_label"])
    lab_logit = h_lab @ wc_label[:, None] + params["bc"]
    outs = []
    for i in range(lead_n):
        h = enc(sequence[:, :, i], params["w_lead_t"][i], params["b_lead"][i],
                params["gamma_lead"][i], params["beta_lead"][i], params["a_lead"][i])
        outs.append(jax.nn.sigmoid(h @ wc_lead[:, None] + lab_logit))
    return jnp.concatenate(outs, axis=1)


def init_params(key, input_size, label_size, hidden_size, lead_n):
    H2 = hidden_size // 2
    ks = jax.random.split(key, 10)

    def lin(k, fan_in, shape):
        bound = 1.0 / float(fan_in) ** 0.5
        return jax.random.uniform(k, shape, jnp.float32, -bound, bound)

    return {
        # per-lead encoders: Linear(input_size, H2) weight^T / bias, BN gamma/beta, PReLU a
        "w_lead_t":    lin(ks[0], input_size, (lead_n, input_size, H2)),
        "b_lead":      lin(ks[1], input_size, (lead_n, H2)),
        "gamma_lead":  1.0 + 0.1 * jax.random.normal(ks[2], (lead_n, H2), jnp.float32),
        "beta_lead":   0.1 * jax.random.normal(ks[3], (lead_n, H2), jnp.float32),
        "a_lead":      jnp.full((lead_n,), 0.25, jnp.float32),    # PReLU default
        # label encoder
        "w_label_t":   lin(ks[4], label_size, (label_size, H2)),
        "b_label":     lin(ks[5], label_size, (H2,)),
        "gamma_label": 1.0 + 0.1 * jax.random.normal(ks[6], (H2,), jnp.float32),
        "beta_label":  0.1 * jax.random.normal(ks[7], (H2,), jnp.float32),
        "a_label":     jnp.float32(0.25),
        # critic: Linear(hidden_size, 1), weight kept in the PyTorch (1, hidden) layout
        "wc":          lin(ks[8], hidden_size, (1, hidden_size)),
        "bc":          lin(ks[9], hidden_size, (1,))[0],
    }


if __name__ == "__main__":
    B, input_size, label_size, hidden_size, lead_n = 8, 16, 4, 32, 4

    key = jax.random.PRNGKey(0)
    kp, kseq, klab = jax.random.split(key, 3)
    params = init_params(kp, input_size, label_size, hidden_size, lead_n)

    sequence = jax.random.normal(kseq, (B, input_size, lead_n), jnp.float32)
    label = jax.random.normal(klab, (B, label_size), jnp.float32)

    out = dense_critic_forward(sequence, label, params)
    out = jax.block_until_ready(out)

    ref = dense_critic_reference(sequence, label, params)
    assert out.shape == (B, lead_n), out.shape
    assert jnp.allclose(out, ref, atol=1e-5, rtol=1e-5), float(jnp.max(jnp.abs(out - ref)))
    print("KERNEL_OK")
</pallas_src>

<mosaic_0001>
module attributes {stable_mosaic.version = 11 : i64} {
  func.func @_dense_critic_kernel(%arg0: memref<1xf32, #tpu.memory_space<smem>>, %arg1: memref<4x8x16xf32, #tpu.memory_space<vmem>>, %arg2: memref<8x4xf32, #tpu.memory_space<vmem>>, %arg3: memref<4x16x16xf32, #tpu.memory_space<vmem>>, %arg4: memref<4x4x16xf32, #tpu.memory_space<vmem>>, %arg5: memref<4x16xf32, #tpu.memory_space<vmem>>, %arg6: memref<4x16xf32, #tpu.memory_space<vmem>>, %arg7: memref<2x16xf32, #tpu.memory_space<vmem>>, %arg8: memref<8x4xf32, #tpu.memory_space<vmem>>) attributes {dimension_semantics = [], scalar_prefetch = 0 : i64, scratch_operands = 0 : i64, tpu.core_type = #tpu.core_type<tc>} {
    %c0 = arith.constant 0 : index
    %0 = memref.load %arg0[%c0] : memref<1xf32, #tpu.memory_space<smem>>
    %c0_0 = arith.constant 0 : index
    %c0_1 = arith.constant 0 : index
    %1 = vector.load %arg7[%c0_0, %c0_1] : memref<2x16xf32, #tpu.memory_space<vmem>>, vector<2x16xf32>
    %2 = vector.extract_strided_slice %1 {offsets = [0, 0], sizes = [1, 16], strides = [1, 1]} : vector<2x16xf32> to vector<1x16xf32>
    %3 = vector.extract_strided_slice %1 {offsets = [1, 0], sizes = [1, 16], strides = [1, 1]} : vector<2x16xf32> to vector<1x16xf32>
    %c0_2 = arith.constant 0 : index
    %c0_3 = arith.constant 0 : index
    %4 = vector.load %arg6[%c0_2, %c0_3] : memref<4x16xf32, #tpu.memory_space<vmem>>, vector<4x16xf32>
    %c0_4 = arith.constant 0 : index
    %c0_5 = arith.constant 0 : index
    %5 = vector.load %arg2[%c0_4, %c0_5] : memref<8x4xf32, #tpu.memory_space<vmem>>, vector<8x4xf32>
    %c0_6 = arith.constant 0 : index
    %c0_7 = arith.constant 0 : index
    %6 = vector.load %arg5[%c0_6, %c0_7] : memref<4x16xf32, #tpu.memory_space<vmem>>, vector<4x16xf32>
    %cst = arith.constant dense<0.000000e+00> : vector<8x16xf32>
    %7 = tpu.matmul %5, %6, %cst {dimension_numbers = #tpu.dot_dimension_numbers<[1], [0], [0], [1], [0, 0, 1, 1], [], []>} : vector<8x4xf32>, vector<4x16xf32>, vector<8x16xf32> -> vector<8x16xf32>
    %8 = vector.extract_strided_slice %4 {offsets = [0, 0], sizes = [1, 16], strides = [1, 1]} : vector<4x16xf32> to vector<1x16xf32>
    %9 = vector.broadcast %8 : vector<1x16xf32> to vector<8x16xf32>
    %10 = arith.addf %7, %9 : vector<8x16xf32>
    %cst_8 = arith.constant dense<0.000000e+00> : vector<16xf32>
    %11 = vector.multi_reduction <add>, %10, %cst_8 [0] : vector<8x16xf32> to vector<16xf32>
    %12 = vector.shape_cast %11 : vector<16xf32> to vector<1x16xf32>
    %cst_9 = arith.constant 8.000000e+00 : f32
    %13 = vector.broadcast %cst_9 : f32 to vector<1x16xf32>
    %14 = arith.divf %12, %13 : vector<1x16xf32>
    %15 = vector.broadcast %14 : vector<1x16xf32> to vector<8x16xf32>
    %16 = arith.subf %10, %15 : vector<8x16xf32>
    %17 = arith.mulf %16, %16 : vector<8x16xf32>
    %cst_10 = arith.constant dense<0.000000e+00> : vector<16xf32>
    %18 = vector.multi_reduction <add>, %17, %cst_10 [0] : vector<8x16xf32> to vector<16xf32>
    %19 = vector.shape_cast %18 : vector<16xf32> to vector<1x16xf32>
    %cst_11 = arith.constant 8.000000e+00 : f32
    %20 = vector.broadcast %cst_11 : f32 to vector<1x16xf32>
    %21 = arith.divf %19, %20 : vector<1x16xf32>
    %22 = vector.broadcast %14 : vector<1x16xf32> to vector<8x16xf32>
    %23 = arith.subf %10, %22 : vector<8x16xf32>
    %cst_12 = arith.constant 9.99999974E-6 : f32
    %24 = vector.broadcast %cst_12 : f32 to vector<1x16xf32>
    %25 = arith.addf %21, %24 : vector<1x16xf32>
    %26 = math.rsqrt %25 : vector<1x16xf32>
    %27 = vector.broadcast %26 : vector<1x16xf32> to vector<8x16xf32>
    %28 = arith.mulf %23, %27 : vector<8x16xf32>
    %29 = vector.extract_strided_slice %4 {offsets = [1, 0], sizes = [1, 16], strides = [1, 1]} : vector<4x16xf32> to vector<1x16xf32>
    %30 = vector.broadcast %29 : vector<1x16xf32> to vector<8x16xf32>
    %31 = arith.mulf %28, %30 : vector<8x16xf32>
    %32 = vector.extract_strided_slice %4 {offsets = [2, 0], sizes = [1, 16], strides = [1, 1]} : vector<4x16xf32> to vector<1x16xf32>
    %33 = vector.broadcast %32 : vector<1x16xf32> to vector<8x16xf32>
    %34 = arith.addf %31, %33 : vector<8x16xf32>
    %cst_13 = arith.constant 0.000000e+00 : f32
    %35 = vector.broadcast %cst_13 : f32 to vector<8x16xf32>
    %36 = arith.cmpf oge, %34, %35 : vector<8x16xf32>
    %37 = vector.extract_strided_slice %4 {offsets = [3, 0], sizes = [1, 16], strides = [1, 1]} : vector<4x16xf32> to vector<1x16xf32>
    %38 = vector.broadcast %37 : vector<1x16xf32> to vector<8x16xf32>
    %39 = arith.mulf %38, %34 : vector<8x16xf32>
    %40 = arith.select %36, %34, %39 : vector<8x16xi1>, vector<8x16xf32>
    %41 = vector.broadcast %3 : vector<1x16xf32> to vector<8x16xf32>
    %42 = arith.mulf %40, %41 : vector<8x16xf32>
    %cst_14 = arith.constant dense<0.000000e+00> : vector<8xf32>
    %43 = vector.multi_reduction <add>, %42, %cst_14 [1] : vector<8x16xf32> to vector<8xf32>
    %44 = vector.shape_cast %43 : vector<8xf32> to vector<8x1xf32>
    %45 = vector.broadcast %0 : f32 to vector<8x1xf32>
    %46 = arith.addf %44, %45 : vector<8x1xf32>
    %c0_15 = arith.constant 0 : index
    %c0_16 = arith.constant 0 : index
    %c0_17 = arith.constant 0 : index
    %47 = vector.load %arg1[%c0_15, %c0_16, %c0_17] : memref<4x8x16xf32, #tpu.memory_space<vmem>>, vector<4x8x16xf32>
    %c0_18 = arith.constant 0 : index
    %c0_19 = arith.constant 0 : index
    %c0_20 = arith.constant 0 : index
    %48 = vector.load %arg3[%c0_18, %c0_19, %c0_20] : memref<4x16x16xf32, #tpu.memory_space<vmem>>, vector<4x16x16xf32>
    "tpu.trace_start"() <{level = 10 : i32, message = "lbi,lih->lbh"}> : () -> ()
    %cst_21 = arith.constant dense<0.000000e+00> : vector<4x8x16xf32>
    %49 = tpu.matmul %47, %48, %cst_21 {dimension_numbers = #tpu.dot_dimension_numbers<[2], [1], [1], [2], [0, 0, 0, 1, 1, 2], [0], [0]>} : vector<4x8x16xf32>, vector<4x16x16xf32>, vector<4x8x16xf32> -> vector<4x8x16xf32>
    "tpu.trace_stop"() : () -> ()
    %c0_22 = arith.constant 0 : index
    %c0_23 = arith.constant 0 : index
    %c0_24 = arith.constant 0 : index
    %50 = vector.load %arg4[%c0_22, %c0_23, %c0_24] : memref<4x4x16xf32, #tpu.memory_space<vmem>>, vector<4x4x16xf32>
    %51 = vector.extract_strided_slice %50 {offsets = [0, 0, 0], sizes = [4, 1, 16], strides = [1, 1, 1]} : vector<4x4x16xf32> to vector<4x1x16xf32>
    %52 = vector.broadcast %51 : vector<4x1x16xf32> to vector<4x8x16xf32>
    %53 = arith.addf %49, %52 : vector<4x8x16xf32>
    %cst_25 = arith.constant dense<0.000000e+00> : vector<4x16xf32>
    %54 = vector.multi_reduction <add>, %53, %cst_25 [1] : vector<4x8x16xf32> to vector<4x16xf32>
    %55 = vector.shape_cast %54 : vector<4x16xf32> to vector<4x1x16xf32>
    %cst_26 = arith.constant 8.000000e+00 : f32
    %56 = vector.broadcast %cst_26 : f32 to vector<4x1x16xf32>
    %57 = arith.divf %55, %56 : vector<4x1x16xf32>
    %58 = vector.broadcast %57 : vector<4x1x16xf32> to vector<4x8x16xf32>
    %59 = arith.subf %53, %58 : vector<4x8x16xf32>
    %60 = arith.mulf %59, %59 : vector<4x8x16xf32>
    %cst_27 = arith.constant dense<0.000000e+00> : vector<4x16xf32>
    %61 = vector.multi_reduction <add>, %60, %cst_27 [1] : vector<4x8x16xf32> to vector<4x16xf32>
    %62 = vector.shape_cast %61 : vector<4x16xf32> to vector<4x1x16xf32>
    %cst_28 = arith.constant 8.000000e+00 : f32
    %63 = vector.broadcast %cst_28 : f32 to vector<4x1x16xf32>
    %64 = arith.divf %62, %63 : vector<4x1x16xf32>
    %65 = vector.broadcast %57 : vector<4x1x16xf32> to vector<4x8x16xf32>
    %66 = arith.subf %53, %65 : vector<4x8x16xf32>
    %cst_29 = arith.constant 9.99999974E-6 : f32
    %67 = vector.broadcast %cst_29 : f32 to vector<4x1x16xf32>
    %68 = arith.addf %64, %67 : vector<4x1x16xf32>
    %69 = math.rsqrt %68 : vector<4x1x16xf32>
    %70 = vector.broadcast %69 : vector<4x1x16xf32> to vector<4x8x16xf32>
    %71 = arith.mulf %66, %70 : vector<4x8x16xf32>
    %72 = vector.extract_strided_slice %50 {offsets = [0, 1, 0], sizes = [4, 1, 16], strides = [1, 1, 1]} : vector<4x4x16xf32> to vector<4x1x16xf32>
    %73 = vector.broadcast %72 : vector<4x1x16xf32> to vector<4x8x16xf32>
    %74 = arith.mulf %71, %73 : vector<4x8x16xf32>
    %75 = vector.extract_strided_slice %50 {offsets = [0, 2, 0], sizes = [4, 1, 16], strides = [1, 1, 1]} : vector<4x4x16xf32> to vector<4x1x16xf32>
    %76 = vector.broadcast %75 : vector<4x1x16xf32> to vector<4x8x16xf32>
    %77 = arith.addf %74, %76 : vector<4x8x16xf32>
    %cst_30 = arith.constant 0.000000e+00 : f32
    %78 = vector.broadcast %cst_30 : f32 to vector<4x8x16xf32>
    %79 = arith.cmpf oge, %77, %78 : vector<4x8x16xf32>
    %80 = vector.extract_strided_slice %50 {offsets = [0, 3, 0], sizes = [4, 1, 16], strides = [1, 1, 1]} : vector<4x4x16xf32> to vector<4x1x16xf32>
    %81 = vector.broadcast %80 : vector<4x1x16xf32> to vector<4x8x16xf32>
    %82 = arith.mulf %81, %77 : vector<4x8x16xf32>
    %83 = arith.select %79, %77, %82 : vector<4x8x16xi1>, vector<4x8x16xf32>
    %84 = vector.extract_strided_slice %83 {offsets = [0, 0, 0], sizes = [1, 8, 16], strides = [1, 1, 1]} : vector<4x8x16xf32> to vector<1x8x16xf32>
    %85 = vector.shape_cast %84 : vector<1x8x16xf32> to vector<8x16xf32>
    %86 = vector.broadcast %2 : vector<1x16xf32> to vector<8x16xf32>
    %87 = arith.mulf %85, %86 : vector<8x16xf32>
    %cst_31 = arith.constant dense<0.000000e+00> : vector<8xf32>
    %88 = vector.multi_reduction <add>, %87, %cst_31 [1] : vector<8x16xf32> to vector<8xf32>
    %89 = vector.shape_cast %88 : vector<8xf32> to vector<8x1xf32>
    %90 = vector.extract_strided_slice %83 {offsets = [1, 0, 0], sizes = [1, 8, 16], strides = [1, 1, 1]} : vector<4x8x16xf32> to vector<1x8x16xf32>
    %91 = vector.shape_cast %90 : vector<1x8x16xf32> to vector<8x16xf32>
    %92 = vector.broadcast %2 : vector<1x16xf32> to vector<8x16xf32>
    %93 = arith.mulf %91, %92 : vector<8x16xf32>
    %cst_32 = arith.constant dense<0.000000e+00> : vector<8xf32>
    %94 = vector.multi_reduction <add>, %93, %cst_32 [1] : vector<8x16xf32> to vector<8xf32>
    %95 = vector.shape_cast %94 : vector<8xf32> to vector<8x1xf32>
    %96 = vector.extract_strided_slice %83 {offsets = [2, 0, 0], sizes = [1, 8, 16], strides = [1, 1, 1]} : vector<4x8x16xf32> to vector<1x8x16xf32>
    %97 = vector.shape_cast %96 : vector<1x8x16xf32> to vector<8x16xf32>
    %98 = vector.broadcast %2 : vector<1x16xf32> to vector<8x16xf32>
    %99 = arith.mulf %97, %98 : vector<8x16xf32>
    %cst_33 = arith.constant dense<0.000000e+00> : vector<8xf32>
    %100 = vector.multi_reduction <add>, %99, %cst_33 [1] : vector<8x16xf32> to vector<8xf32>
    %101 = vector.shape_cast %100 : vector<8xf32> to vector<8x1xf32>
    %102 = vector.extract_strided_slice %83 {offsets = [3, 0, 0], sizes = [1, 8, 16], strides = [1, 1, 1]} : vector<4x8x16xf32> to vector<1x8x16xf32>
    %103 = vector.shape_cast %102 : vector<1x8x16xf32> to vector<8x16xf32>
    %104 = vector.broadcast %2 : vector<1x16xf32> to vector<8x16xf32>
    %105 = arith.mulf %103, %104 : vector<8x16xf32>
    %cst_34 = arith.constant dense<0.000000e+00> : vector<8xf32>
    %106 = vector.multi_reduction <add>, %105, %cst_34 [1] : vector<8x16xf32> to vector<8xf32>
    %107 = vector.shape_cast %106 : vector<8xf32> to vector<8x1xf32>
    %108 = tpu.concatenate %89, %95, %101, %107 in 1 : vector<8x1xf32>, vector<8x1xf32>, vector<8x1xf32>, vector<8x1xf32> -> vector<8x4xf32>
    %109 = vector.broadcast %46 : vector<8x1xf32> to vector<8x4xf32>
    %110 = arith.addf %108, %109 : vector<8x4xf32>
    %111 = arith.negf %110 : vector<8x4xf32>
    %112 = math.exp %111 : vector<8x4xf32>
    %cst_35 = arith.constant 1.000000e+00 : f32
    %113 = vector.broadcast %cst_35 : f32 to vector<8x4xf32>
    %114 = arith.addf %113, %112 : vector<8x4xf32>
    %115 = arith.divf %113, %114 : vector<8x4xf32>
    %c0_36 = arith.constant 0 : index
    %c0_37 = arith.constant 0 : index
    %116 = vector.load %arg8[%c0_36, %c0_37] : memref<8x4xf32, #tpu.memory_space<vmem>>, vector<8x4xf32>
    tpu.vector_store %arg8[%c0_36, %c0_37], %115 {strides = array<i32>} : memref<8x4xf32, #tpu.memory_space<vmem>>, vector<8x4xf32>,
    return
  }
}

</mosaic_0001>

<llo_original>
// kernel: tpu_custom_call.1
$region0: #{tpu_custom_call.1}
  #allocation0 [shape = 'u32[]', space=smem, size = 0x4, offset = 0x4, fixed_abs, tag = 'smem constant byte address 0x4 - core index']
  #allocation1 [shape = 'u32[144,128]{1,0:T(1,128)}', space=vmem, size = 0x12000, scoped, tag = 'internal scratch']
  #allocation2 [shape = 'f32[1]{0:T(128)S(6)}', space=smem, size = 0x200, scoped, tag = 'scoped memory for tpu_custom_call.1']
  %s0 = inlined_call_operand.<no memory space> [shape: f32[1], index: 0, kind: input, shape index: {}]
  %s1 = inlined_call_operand.hbm [shape: f32[4,8,16], index: 1, kind: input, shape index: {}]
  %s2 = inlined_call_operand.vmem [shape: f32[8,4], index: 2, kind: input, shape index: {}]
  %s3 = inlined_call_operand.hbm [shape: f32[4,16,16], index: 3, kind: input, shape index: {}]
  %s4 = inlined_call_operand.vmem [shape: f32[4,4,16], index: 4, kind: input, shape index: {}]
  %s5 = inlined_call_operand.vmem [shape: f32[4,16], index: 5, kind: input, shape index: {}]
  %s6 = inlined_call_operand.vmem [shape: f32[4,16], index: 6, kind: input, shape index: {}]
  %s7 = inlined_call_operand.vmem [shape: f32[2,16], index: 7, kind: input, shape index: {}]
  %s8 = inlined_call_operand.vmem [shape: f32[8,4], index: 8, kind: output, shape index: {}]
  %s9 = sld [smem:[#allocation0]]
  $region50: #{tpu_custom_call.1} parent=0
    _
  %s11 = ssub.s32 1, %s9
  %s12 = scalar_select 0, %s11, %s9
  %13 = sst [smem:[#allocation2]] %s0
  $region1: #{tpu_custom_call.1} parent=0
    #allocation3 [shape = 'u8[16384]{0}', space=vmem, size = 0x4000, scoped, tag = 'input window, operand 1, single buffered']
    #allocation4 [shape = 's32[1]{0}', space=sflag, size = 0x4, scoped, tag = 'scoped memory for tpu_custom_call.1']
    #allocation5 [shape = 'u8[32768]{0}', space=vmem, size = 0x8000, scoped, tag = 'input window, operand 3, single buffered']
    #allocation6 [shape = 's32[1]{0}', space=sflag, size = 0x4, scoped, tag = 'scoped memory for tpu_custom_call.1']
    %14 = vsyncpa [#allocation4], 0
    %15 = vsyncpa [#allocation6], 0
    // Predicated region
    $region2: #{tpu_custom_call.1} parent=1 // pred_check
      _
    $region3: #{tpu_custom_call.1} parent=1 // pred_check_branch
      %17 = sbr.rel (0) target = $region5
    $region4: #{tpu_custom_call.1} parent=1 // pred_region
      _
    $region5: #{tpu_custom_call.1} parent=1 // pred_fallthru
      _
    // Predicated region
    $region6: #{tpu_custom_call.1} parent=1 // pred_check
      _
    $region7: #{tpu_custom_call.1} parent=1 // pred_check_branch
      %19 = sbr.rel (0) target = $region9
    $region8: #{tpu_custom_call.1} parent=1 // pred_region
      %s21 = ssub.s32 512, 512
      %22 = vsyncadd [#allocation4], %s21
      %s23 = sshll.u32 [#allocation3], 4
      %s24 = int_to_ptr.vmem [resolvable:$true] %s23
      %29 = dma.hbm_to_vmem [thread:$0]  %s1, 512, %s24, [#allocation4], 128, 128, 8
    $region9: #{tpu_custom_call.1} parent=1 // pred_fallthru
      _
    // Predicated region
    $region10: #{tpu_custom_call.1} parent=1 // pred_check
      _
    $region11: #{tpu_custom_call.1} parent=1 // pred_check_branch
      %31 = sbr.rel (0) target = $region13
    $region12: #{tpu_custom_call.1} parent=1 // pred_region
      _
    $region13: #{tpu_custom_call.1} parent=1 // pred_fallthru
      _
    // Predicated region
    $region14: #{tpu_custom_call.1} parent=1 // pred_check
      _
    $region15: #{tpu_custom_call.1} parent=1 // pred_check_branch
      %33 = sbr.rel (0) target = $region17
    $region16: #{tpu_custom_call.1} parent=1 // pred_region
      %s35 = ssub.s32 1024, 1024
      %36 = vsyncadd [#allocation6], %s35
      %s37 = sshll.u32 [#allocation5], 4
      %s38 = int_to_ptr.vmem [resolvable:$true] %s37
      %43 = dma.hbm_to_vmem [thread:$0]  %s3, 1024, %s38, [#allocation6], 128, 128, 8
    $region17: #{tpu_custom_call.1} parent=1 // pred_fallthru
      _
    // Predicated region
    $region18: #{tpu_custom_call.1} parent=1 // pred_check
      _
    $region19: #{tpu_custom_call.1} parent=1 // pred_check_branch
      %45 = sbr.rel (0) target = $region21
    $region20: #{tpu_custom_call.1} parent=1 // pred_region
      _
    $region21: #{tpu_custom_call.1} parent=1 // pred_fallthru
      _
    // Predicated region
    $region22: #{tpu_custom_call.1} parent=1 // pred_check
      _
    $region23: #{tpu_custom_call.1} parent=1 // pred_check_branch
      %47 = sbr.rel (0) target = $region25
    $region24: #{tpu_custom_call.1} parent=1 // pred_region
      _
    $region25: #{tpu_custom_call.1} parent=1 // pred_fallthru
      _
    // Predicated region
    $region26: #{tpu_custom_call.1} parent=1 // pred_check
      _
    $region27: #{tpu_custom_call.1} parent=1 // pred_check_branch
      %49 = sbr.rel (0) target = $region29
    $region28: #{tpu_custom_call.1} parent=1 // pred_region
      _
    $region29: #{tpu_custom_call.1} parent=1 // pred_fallthru
      _
    // Predicated region
    $region30: #{tpu_custom_call.1} parent=1 // pred_check
      _
    $region31: #{tpu_custom_call.1} parent=1 // pred_check_branch
      %51 = sbr.rel (0) target = $region33
    $region32: #{tpu_custom_call.1} parent=1 // pred_region
      _
    $region33: #{tpu_custom_call.1} parent=1 // pred_fallthru
      _
    // Predicated region
    $region34: #{tpu_custom_call.1} parent=1 // pred_check
      _
    $region35: #{tpu_custom_call.1} parent=1 // pred_check_branch
      %53 = sbr.rel (0) target = $region37
    $region36: #{tpu_custom_call.1} parent=1 // pred_region
      %54 = dma.done [#allocation4], 512
    $region37: #{tpu_custom_call.1} parent=1 // pred_fallthru
      _
    // Predicated region
    $region38: #{tpu_custom_call.1} parent=1 // pred_check
      _
    $region39: #{tpu_custom_call.1} parent=1 // pred_check_branch
      %56 = sbr.rel (0) target = $region41
    $region40: #{tpu_custom_call.1} parent=1 // pred_region
      %57 = dma.done [#allocation6], 1024
    $region41: #{tpu_custom_call.1} parent=1 // pred_fallthru
      _
    %s58 = sld [smem:[#allocation2]]
    %v59 = vld [vmem:[%s7] sm:$0x3]
    %v60 = vld [vmem:[%s6] sm:$0xf]
    %v61 = vld [vmem:[%s2] sm:$0xff]
    %v62 = vld [vmem:[%s5] sm:$0xf]
    %v63 = vlaneseq
    %v64 = vshrl.u32 %v63, 7
    %v65 = vsub.s32 0, %v64
    %v66 = vrot.slane %v60, %v65
    %vm67 = vcmask 31744
    %v69 = vsel %vm67, %v61, 0
    %vm71 = vcmask 1043456
    %v73 = vsel %vm71, %v62, 0
    %75 = vmatprep.subr.mxu0 0.0
    %76 = vmatpush1.msra.mxu0 %v73
    %77 = vmatprep.subr.mxu0 0.0
    %78 = vmatpush1.msra.mxu0 0.0
    %79 = vmatprep.subr.mxu0 0.0
    %80 = vmatpush1.msra.mxu0 0.0
    %81 = vmatprep.subr.mxu0 0.0
    %82 = vmatpush1.msra.mxu0 0.0
    %83 = vmatprep.subr.mxu0 0.0
    %84 = vmatpush1.msra.mxu0 0.0
    %85 = vmatprep.subr.mxu0 0.0
    %86 = vmatpush1.msra.mxu0 0.0
    %87 = vmatprep.subr.mxu0 0.0
    %88 = vmatpush1.msra.mxu0 0.0
    %89 = vmatprep.subr.mxu0 0.0
    %90 = vmatpush1.msra.mxu0 0.0
    %91 = vmatprep.subr.mxu0 0.0
    %92 = vmatpush1.msra.mxu0 0.0
    %93 = vmatprep.subr.mxu0 0.0
    %94 = vmatpush1.msra.mxu0 0.0
    %95 = vmatprep.subr.mxu0 0.0
    %96 = vmatpush1.msra.mxu0 0.0
    %97 = vmatprep.subr.mxu0 0.0
    %98 = vmatpush1.msra.mxu0 0.0
    %99 = vmatprep.subr.mxu0 0.0
    %100 = vmatpush1.msra.mxu0 0.0
    %101 = vmatprep.subr.mxu0 0.0
    %102 = vmatpush1.msra.mxu0 0.0
    %103 = vmatprep.subr.mxu0 0.0
    %104 = vmatpush1.msra.mxu0 0.0
    %105 = vmatprep.subr.mxu0 0.0
    %106 = vmatpush1.msra.mxu0 0.0
    %107 = vmatprep.subr.mxu0 0.0
    %108 = vmatpush1.msra.mxu0 0.0
    %109 = vmatprep.subr.mxu0 0.0
    %110 = vmatpush1.msra.mxu0 0.0
    %111 = vmatprep.subr.mxu0 0.0
    %112 = vmatpush1.msra.mxu0 0.0
    %113 = vmatprep.subr.mxu0 0.0
    %114 = vmatpush1.msra.mxu0 0.0
    %115 = vmatprep.subr.mxu0 0.0
    %116 = vmatpush1.msra.mxu0 0.0
    %117 = vmatprep.subr.mxu0 0.0
    %118 = vmatpush1.msra.mxu0 0.0
    %119 = vmatprep.subr.mxu0 0.0
    %120 = vmatpush1.msra.mxu0 0.0
    %121 = vmatprep.subr.mxu0 0.0
    %122 = vmatpush1.msra.mxu0 0.0
    %123 = vmatprep.subr.mxu0 0.0
    %124 = vmatpush1.msra.mxu0 0.0
    %125 = vmatprep.subr.mxu0 0.0
    %126 = vmatpush1.msra.mxu0 0.0
    %127 = vmatprep.subr.mxu0 0.0
    %128 = vmatpush1.msra.mxu0 0.0
    %129 = vmatprep.subr.mxu0 0.0
    %130 = vmatpush1.msra.mxu0 0.0
    %131 = vmatprep.subr.mxu0 0.0
    %132 = vmatpush1.msra.mxu0 0.0
    %133 = vmatprep.subr.mxu0 0.0
    %134 = vmatpush1.msra.mxu0 0.0
    %135 = vmatprep.subr.mxu0 0.0
    %136 = vmatpush1.msra.mxu0 0.0
    %137 = vmatprep.subr.mxu0 0.0
    %138 = vmatpush1.msra.mxu0 0.0
    %139 = vmatprep.mubr.f32.mxu0 0.0
    %140 = vmatmul.mubr.f32.gmra.mrb[0].mxu0 %v69
    %v141 = vpop.f32.mrb[0].mxu0
    %v142 = vadd.f32 %v66, %v141
    %v143 = vpop.f32.mrb[0].mxu0
    %144 = vdwg.mxu0
    %vm145 = vcmask 130048
    %v146 = vsel %vm145, %v142, 0.0
    %v147 = vrot.slane %v146, 4
    %v148 = vadd.f32 %v146, %v147
    %v149 = vrot.slane %v148, 2
    %v150 = vadd.f32 %v148, %v149
    %v151 = vrot.slane %v150, 1
    %v152 = vadd.f32 %v150, %v151
    %v153 = vrcp.pop 8.0
    %v154 = vmul.f32 %v152, %v153
    %v155 = vsub.f32 %v142, %v154
    %v156 = vmul.f32 %v155, %v155
    %v157 = vsel %vm145, %v156, 0.0
    %v158 = vrot.slane %v157, 4
    %v159 = vadd.f32 %v157, %v158
    %v160 = vrot.slane %v159, 2
    %v161 = vadd.f32 %v159, %v160
    %v162 = vrot.slane %v161, 1
    %v163 = vadd.f32 %v161, %v162
    %v164 = vmul.f32 %v163, %v153
    %v165 = vadd.f32 %v164, 1e-05
    %v166 = vrsqrt.pop %v165
    %v167 = vmul.f32 %v155, %v166
    %v168 = vlaneseq
    %v169 = vshrl.u32 %v168, 7
    %v170 = vsub.s32 1, %v169
    %v171 = vrot.slane %v60, %v170
    %v172 = vmul.f32 %v167, %v171
    %v173 = vlaneseq
    %v174 = vshrl.u32 %v173, 7
    %v175 = vsub.s32 2, %v174
    %v176 = vrot.slane %v60, %v175
    %v177 = vadd.f32 %v172, %v176
    %vm178 = vcmp.ge.f32.partialorder %v177, 0.0
    %v179 = vlaneseq
    %v180 = vshrl.u32 %v179, 7
    %v181 = vsub.s32 3, %v180
    %v182 = vrot.slane %v60, %v181
    %v183 = vmul.f32 %v182, %v177
    %v184 = vsel %vm178, %v177, %v183
    %v185 = vlaneseq
    %v186 = vshrl.u32 %v185, 7
    %v187 = vsub.s32 1, %v186
    %v188 = vrot.slane %v59, %v187
    %v189 = vmul.f32 %v184, %v188
    %v190 = vsel %vm145, %v189, 0.0
    %191 = vadd.xlane.f32.xlu0 %v190
    %v192 = vpop.xlane.xlu0 %191
    %v193 = vstv %s58
    %v194 = vadd.f32 %v192, %v193
    %v195 = vld [vmem:[#allocation3] sm:$0xff]
    %v196 = vld [vmem:[#allocation3 + $0x8] sm:$0xff]
    %v197 = vld [vmem:[#allocation3 + $0x10] sm:$0xff]
    %v198 = vld [vmem:[#allocation3 + $0x18] sm:$0xff]
    %v199 = vld [vmem:[#allocation5] sm:$0xff]
    %v200 = vld [vmem:[#allocation5 + $0x8] sm:$0xff]
    %v201 = vld [vmem:[#allocation5 + $0x10] sm:$0xff]
    %v202 = vld [vmem:[#allocation5 + $0x18] sm:$0xff]
    %v203 = vld [vmem:[#allocation5 + $0x20] sm:$0xff]
    %v204 = vld [vmem:[#allocation5 + $0x28] sm:$0xff]
    %v205 = vld [vmem:[#allocation5 + $0x30] sm:$0xff]
    %v206 = vld [vmem:[#allocation5 + $0x38] sm:$0xff]
    %v207 = vld [vmem:[%s4] sm:$0xf]
    %v208 = vld [vmem:[%s4 + $0x4] sm:$0xf]
    %v209 = vld [vmem:[%s4 + $0x8] sm:$0xf]
    %v210 = vld [vmem:[%s4 + $0xc] sm:$0xf]
    %v211 = vlaneseq
    %v212 = vshrl.u32 %v211, 7
    %v213 = vsub.s32 0, %v212
    %v214 = vrot.slane %v207, %v213
    %v215 = vlaneseq
    %v216 = vshrl.u32 %v215, 7
    %v217 = vsub.s32 0, %v216
    %v218 = vrot.slane %v208, %v217
    %v219 = vlaneseq
    %v220 = vshrl.u32 %v219, 7
    %v221 = vsub.s32 0, %v220
    %v222 = vrot.slane %v209, %v221
    %v223 = vlaneseq
    %v224 = vshrl.u32 %v223, 7
    %v225 = vsub.s32 0, %v224
    %v226 = vrot.slane %v210, %v225
    %v228 = vsel %vm145, %v195, 0
    %230 = vmatprep.subr.mxu0 0.0
    %231 = vmatpush1.msra.mxu0 %v199
    %232 = vmatprep.subr.mxu0 0.0
    %233 = vmatpush1.msra.mxu0 %v200
    %234 = vmatprep.subr.mxu0 0.0
    %235 = vmatpush1.msra.mxu0 0.0
    %236 = vmatprep.subr.mxu0 0.0
    %237 = vmatpush1.msra.mxu0 0.0
    %238 = vmatprep.subr.mxu0 0.0
    %239 = vmatpush1.msra.mxu0 0.0
    %240 = vmatprep.subr.mxu0 0.0
    %241 = vmatpush1.msra.mxu0 0.0
    %242 = vmatprep.subr.mxu0 0.0
    %243 = vmatpush1.msra.mxu0 0.0
    %244 = vmatprep.subr.mxu0 0.0
    %245 = vmatpush1.msra.mxu0 0.0
    %246 = vmatprep.subr.mxu0 0.0
    %247 = vmatpush1.msra.mxu0 0.0
    %248 = vmatprep.subr.mxu0 0.0
    %249 = vmatpush1.msra.mxu0 0.0
    %250 = vmatprep.subr.mxu0 0.0
    %251 = vmatpush1.msra.mxu0 0.0
    %252 = vmatprep.subr.mxu0 0.0
    %253 = vmatpush1.msra.mxu0 0.0
    %254 = vmatprep.subr.mxu0 0.0
    %255 = vmatpush1.msra.mxu0 0.0
    %256 = vmatprep.subr.mxu0 0.0
    %257 = vmatpush1.msra.mxu0 0.0
    %258 = vmatprep.subr.mxu0 0.0
    %259 = vmatpush1.msra.mxu0 0.0
    %260 = vmatprep.subr.mxu0 0.0
    %261 = vmatpush1.msra.mxu0 0.0
    %262 = vmatprep.subr.mxu0 0.0
    %263 = vmatpush1.msra.mxu0 0.0
    %264 = vmatprep.subr.mxu0 0.0
    %265 = vmatpush1.msra.mxu0 0.0
    %266 = vmatprep.subr.mxu0 0.0
    %267 = vmatpush1.msra.mxu0 0.0
    %268 = vmatprep.subr.mxu0 0.0
    %269 = vmatpush1.msra.mxu0 0.0
    %270 = vmatprep.subr.mxu0 0.0
    %271 = vmatpush1.msra.mxu0 0.0
    %272 = vmatprep.subr.mxu0 0.0
    %273 = vmatpush1.msra.mxu0 0.0
    %274 = vmatprep.subr.mxu0 0.0
    %275 = vmatpush1.msra.mxu0 0.0
    %276 = vmatprep.subr.mxu0 0.0
    %277 = vmatpush1.msra.mxu0 0.0
    %278 = vmatprep.subr.mxu0 0.0
    %279 = vmatpush1.msra.mxu0 0.0
    %280 = vmatprep.subr.mxu0 0.0
    %281 = vmatpush1.msra.mxu0 0.0
    %282 = vmatprep.subr.mxu0 0.0
    %283 = vmatpush1.msra.mxu0 0.0
    %284 = vmatprep.subr.mxu0 0.0
    %285 = vmatpush1.msra.mxu0 0.0
    %286 = vmatprep.subr.mxu0 0.0
    %287 = vmatpush1.msra.mxu0 0.0
    %288 = vmatprep.subr.mxu0 0.0
    %289 = vmatpush1.msra.mxu0 0.0
    %290 = vmatprep.subr.mxu0 0.0
    %291 = vmatpush1.msra.mxu0 0.0
    %292 = vmatprep.subr.mxu0 0.0
    %293 = vmatpush1.msra.mxu0 0.0
    %294 = vmatprep.mubr.f32.mxu0 0.0
    %295 = vmatmul.mubr.f32.gmra.mrb[0].mxu0 %v228
    %v296 = vpop.f32.mrb[0].mxu0
    %v297 = vadd.f32 %v214, %v296
    %v298 = vpop.f32.mrb[0].mxu0
    %299 = vdwg.mxu0
    %v301 = vsel %vm145, %v196, 0
    %303 = vmatprep.subr.mxu0 0.0
    %304 = vmatpush1.msra.mxu0 %v201
    %305 = vmatprep.subr.mxu0 0.0
    %306 = vmatpush1.msra.mxu0 %v202
    %307 = vmatprep.subr.mxu0 0.0
    %308 = vmatpush1.msra.mxu0 0.0
    %309 = vmatprep.subr.mxu0 0.0
    %310 = vmatpush1.msra.mxu0 0.0
    %311 = vmatprep.subr.mxu0 0.0
    %312 = vmatpush1.msra.mxu0 0.0
    %313 = vmatprep.subr.mxu0 0.0
    %314 = vmatpush1.msra.mxu0 0.0
    %315 = vmatprep.subr.mxu0 0.0
    %316 = vmatpush1.msra.mxu0 0.0
    %317 = vmatprep.subr.mxu0 0.0
    %318 = vmatpush1.msra.mxu0 0.0
    %319 = vmatprep.subr.mxu0 0.0
    %320 = vmatpush1.msra.mxu0 0.0
    %321 = vmatprep.subr.mxu0 0.0
    %322 = vmatpush1.msra.mxu0 0.0
    %323 = vmatprep.subr.mxu0 0.0
    %324 = vmatpush1.msra.mxu0 0.0
    %325 = vmatprep.subr.mxu0 0.0
    %326 = vmatpush1.msra.mxu0 0.0
    %327 = vmatprep.subr.mxu0 0.0
    %328 = vmatpush1.msra.mxu0 0.0
    %329 = vmatprep.subr.mxu0 0.0
    %330 = vmatpush1.msra.mxu0 0.0
    %331 = vmatprep.subr.mxu0 0.0
    %332 = vmatpush1.msra.mxu0 0.0
    %333 = vmatprep.subr.mxu0 0.0
    %334 = vmatpush1.msra.mxu0 0.0
    %335 = vmatprep.subr.mxu0 0.0
    %336 = vmatpush1.msra.mxu0 0.0
    %337 = vmatprep.subr.mxu0 0.0
    %338 = vmatpush1.msra.mxu0 0.0
    %339 = vmatprep.subr.mxu0 0.0
    %340 = vmatpush1.msra.mxu0 0.0
    %341 = vmatprep.subr.mxu0 0.0
    %342 = vmatpush1.msra.mxu0 0.0
    %343 = vmatprep.subr.mxu0 0.0
    %344 = vmatpush1.msra.mxu0 0.0
    %345 = vmatprep.subr.mxu0 0.0
    %346 = vmatpush1.msra.mxu0 0.0
    %347 = vmatprep.subr.mxu0 0.0
    %348 = vmatpush1.msra.mxu0 0.0
    %349 = vmatprep.subr.mxu0 0.0
    %350 = vmatpush1.msra.mxu0 0.0
    %351 = vmatprep.subr.mxu0 0.0
    %352 = vmatpush1.msra.mxu0 0.0
    %353 = vmatprep.subr.mxu0 0.0
    %354 = vmatpush1.msra.mxu0 0.0
    %355 = vmatprep.subr.mxu0 0.0
    %356 = vmatpush1.msra.mxu0 0.0
    %357 = vmatprep.subr.mxu0 0.0
    %358 = vmatpush1.msra.mxu0 0.0
    %359 = vmatprep.subr.mxu0 0.0
    %360 = vmatpush1.msra.mxu0 0.0
    %361 = vmatprep.subr.mxu0 0.0
    %362 = vmatpush1.msra.mxu0 0.0
    %363 = vmatprep.subr.mxu0 0.0
    %364 = vmatpush1.msra.mxu0 0.0
    %365 = vmatprep.subr.mxu0 0.0
    %366 = vmatpush1.msra.mxu0 0.0
    %367 = vmatprep.mubr.f32.mxu0 0.0
    %368 = vmatmul.mubr.f32.gmra.mrb[0].mxu0 %v301
    %v369 = vpop.f32.mrb[0].mxu0
    %v370 = vadd.f32 %v218, %v369
    %v371 = vpop.f32.mrb[0].mxu0
    %372 = vdwg.mxu0
    %v374 = vsel %vm145, %v197, 0
    %376 = vmatprep.subr.mxu0 0.0
    %377 = vmatpush1.msra.mxu0 %v203
    %378 = vmatprep.subr.mxu0 0.0
    %379 = vmatpush1.msra.mxu0 %v204
    %380 = vmatprep.subr.mxu0 0.0
    %381 = vmatpush1.msra.mxu0 0.0
    %382 = vmatprep.subr.mxu0 0.0
    %383 = vmatpush1.msra.mxu0 0.0
    %384 = vmatprep.subr.mxu0 0.0
    %385 = vmatpush1.msra.mxu0 0.0
    %386 = vmatprep.subr.mxu0 0.0
    %387 = vmatpush1.msra.mxu0 0.0
    %388 = vmatprep.subr.mxu0 0.0
    %389 = vmatpush1.msra.mxu0 0.0
    %390 = vmatprep.subr.mxu0 0.0
    %391 = vmatpush1.msra.mxu0 0.0
    %392 = vmatprep.subr.mxu0 0.0
    %393 = vmatpush1.msra.mxu0 0.0
    %394 = vmatprep.subr.mxu0 0.0
    %395 = vmatpush1.msra.mxu0 0.0
    %396 = vmatprep.subr.mxu0 0.0
    %397 = vmatpush1.msra.mxu0 0.0
    %398 = vmatprep.subr.mxu0 0.0
    %399 = vmatpush1.msra.mxu0 0.0
    %400 = vmatprep.subr.mxu0 0.0
    %401 = vmatpush1.msra.mxu0 0.0
    %402 = vmatprep.subr.mxu0 0.0
    %403 = vmatpush1.msra.mxu0 0.0
    %404 = vmatprep.subr.mxu0 0.0
    %405 = vmatpush1.msra.mxu0 0.0
    %406 = vmatprep.subr.mxu0 0.0
    %407 = vmatpush1.msra.mxu0 0.0
    %408 = vmatprep.subr.mxu0 0.0
    %409 = vmatpush1.msra.mxu0 0.0
    %410 = vmatprep.subr.mxu0 0.0
    %411 = vmatpush1.msra.mxu0 0.0
    %412 = vmatprep.subr.mxu0 0.0
    %413 = vmatpush1.msra.mxu0 0.0
    %414 = vmatprep.subr.mxu0 0.0
    %415 = vmatpush1.msra.mxu0 0.0
    %416 = vmatprep.subr.mxu0 0.0
    %417 = vmatpush1.msra.mxu0 0.0
    %418 = vmatprep.subr.mxu0 0.0
    %419 = vmatpush1.msra.mxu0 0.0
    %420 = vmatprep.subr.mxu0 0.0
    %421 = vmatpush1.msra.mxu0 0.0
    %422 = vmatprep.subr.mxu0 0.0
    %423 = vmatpush1.msra.mxu0 0.0
    %424 = vmatprep.subr.mxu0 0.0
    %425 = vmatpush1.msra.mxu0 0.0
    %426 = vmatprep.subr.mxu0 0.0
    %427 = vmatpush1.msra.mxu0 0.0
    %428 = vmatprep.subr.mxu0 0.0
    %429 = vmatpush1.msra.mxu0 0.0
    %430 = vmatprep.subr.mxu0 0.0
    %431 = vmatpush1.msra.mxu0 0.0
    %432 = vmatprep.subr.mxu0 0.0
    %433 = vmatpush1.msra.mxu0 0.0
    %434 = vmatprep.subr.mxu0 0.0
    %435 = vmatpush1.msra.mxu0 0.0
    %436 = vmatprep.subr.mxu0 0.0
    %437 = vmatpush1.msra.mxu0 0.0
    %438 = vmatprep.subr.mxu0 0.0
    %439 = vmatpush1.msra.mxu0 0.0
    %440 = vmatprep.mubr.f32.mxu0 0.0
    %441 = vmatmul.mubr.f32.gmra.mrb[0].mxu0 %v374
    %v442 = vpop.f32.mrb[0].mxu0
    %v443 = vadd.f32 %v222, %v442
    %v444 = vpop.f32.mrb[0].mxu0
    %445 = vdwg.mxu0
    %v447 = vsel %vm145, %v198, 0
    %449 = vmatprep.subr.mxu0 0.0
    %450 = vmatpush1.msra.mxu0 %v205
    %451 = vmatprep.subr.mxu0 0.0
    %452 = vmatpush1.msra.mxu0 %v206
    %453 = vmatprep.subr.mxu0 0.0
    %454 = vmatpush1.msra.mxu0 0.0
    %455 = vmatprep.subr.mxu0 0.0
    %456 = vmatpush1.msra.mxu0 0.0
    %457 = vmatprep.subr.mxu0 0.0
    %458 = vmatpush1.msra.mxu0 0.0
    %459 = vmatprep.subr.mxu0 0.0
    %460 = vmatpush1.msra.mxu0 0.0
    %461 = vmatprep.subr.mxu0 0.0
    %462 = vmatpush1.msra.mxu0 0.0
    %463 = vmatprep.subr.mxu0 0.0
    %464 = vmatpush1.msra.mxu0 0.0
    %465 = vmatprep.subr.mxu0 0.0
    %466 = vmatpush1.msra.mxu0 0.0
    %467 = vmatprep.subr.mxu0 0.0
    %468 = vmatpush1.msra.mxu0 0.0
    %469 = vmatprep.subr.mxu0 0.0
    %470 = vmatpush1.msra.mxu0 0.0
    %471 = vmatprep.subr.mxu0 0.0
    %472 = vmatpush1.msra.mxu0 0.0
    %473 = vmatprep.subr.mxu0 0.0
    %474 = vmatpush1.msra.mxu0 0.0
    %475 = vmatprep.subr.mxu0 0.0
    %476 = vmatpush1.msra.mxu0 0.0
    %477 = vmatprep.subr.mxu0 0.0
    %478 = vmatpush1.msra.mxu0 0.0
    %479 = vmatprep.subr.mxu0 0.0
    %480 = vmatpush1.msra.mxu0 0.0
    %481 = vmatprep.subr.mxu0 0.0
    %482 = vmatpush1.msra.mxu0 0.0
    %483 = vmatprep.subr.mxu0 0.0
    %484 = vmatpush1.msra.mxu0 0.0
    %485 = vmatprep.subr.mxu0 0.0
    %486 = vmatpush1.msra.mxu0 0.0
    %487 = vmatprep.subr.mxu0 0.0
    %488 = vmatpush1.msra.mxu0 0.0
    %489 = vmatprep.subr.mxu0 0.0
    %490 = vmatpush1.msra.mxu0 0.0
    %491 = vmatprep.subr.mxu0 0.0
    %492 = vmatpush1.msra.mxu0 0.0
    %493 = vmatprep.subr.mxu0 0.0
    %494 = vmatpush1.msra.mxu0 0.0
    %495 = vmatprep.subr.mxu0 0.0
    %496 = vmatpush1.msra.mxu0 0.0
    %497 = vmatprep.subr.mxu0 0.0
    %498 = vmatpush1.msra.mxu0 0.0
    %499 = vmatprep.subr.mxu0 0.0
    %500 = vmatpush1.msra.mxu0 0.0
    %501 = vmatprep.subr.mxu0 0.0
    %502 = vmatpush1.msra.mxu0 0.0
    %503 = vmatprep.subr.mxu0 0.0
    %504 = vmatpush1.msra.mxu0 0.0
    %505 = vmatprep.subr.mxu0 0.0
    %506 = vmatpush1.msra.mxu0 0.0
    %507 = vmatprep.subr.mxu0 0.0
    %508 = vmatpush1.msra.mxu0 0.0
    %509 = vmatprep.subr.mxu0 0.0
    %510 = vmatpush1.msra.mxu0 0.0
    %511 = vmatprep.subr.mxu0 0.0
    %512 = vmatpush1.msra.mxu0 0.0
    %513 = vmatprep.mubr.f32.mxu0 0.0
    %514 = vmatmul.mubr.f32.gmra.mrb[0].mxu0 %v447
    %v515 = vpop.f32.mrb[0].mxu0
    %v516 = vadd.f32 %v226, %v515
    %v517 = vpop.f32.mrb[0].mxu0
    %518 = vdwg.mxu0
    %v519 = vsel %vm145, %v297, 0.0
    %v520 = vrot.slane %v519, 4
    %v521 = vadd.f32 %v519, %v520
    %v522 = vrot.slane %v521, 2
    %v523 = vadd.f32 %v521, %v522
    %v524 = vrot.slane %v523, 1
    %v525 = vadd.f32 %v523, %v524
    %v526 = vsel %vm145, %v370, 0.0
    %v527 = vrot.slane %v526, 4
    %v528 = vadd.f32 %v526, %v527
    %v529 = vrot.slane %v528, 2
    %v530 = vadd.f32 %v528, %v529
    %v531 = vrot.slane %v530, 1
    %v532 = vadd.f32 %v530, %v531
    %v533 = vsel %vm145, %v443, 0.0
    %v534 = vrot.slane %v533, 4
    %v535 = vadd.f32 %v533, %v534
    %v536 = vrot.slane %v535, 2
    %v537 = vadd.f32 %v535, %v536
    %v538 = vrot.slane %v537, 1
    %v539 = vadd.f32 %v537, %v538
    %v540 = vsel %vm145, %v516, 0.0
    %v541 = vrot.slane %v540, 4
    %v542 = vadd.f32 %v540, %v541
    %v543 = vrot.slane %v542, 2
    %v544 = vadd.f32 %v542, %v543
    %v545 = vrot.slane %v544, 1
    %v546 = vadd.f32 %v544, %v545
    %v547 = vmul.f32 %v525, %v153
    %v548 = vmul.f32 %v532, %v153
    %v549 = vmul.f32 %v539, %v153
    %v550 = vmul.f32 %v546, %v153
    %v551 = vsub.f32 %v297, %v547
    %v552 = vsub.f32 %v370, %v548
    %v553 = vsub.f32 %v443, %v549
    %v554 = vsub.f32 %v516, %v550
    %v555 = vmul.f32 %v551, %v551
    %v556 = vmul.f32 %v552, %v552
    %v557 = vmul.f32 %v553, %v553
    %v558 = vmul.f32 %v554, %v554
    %v559 = vsel %vm145, %v555, 0.0
    %v560 = vrot.slane %v559, 4
    %v561 = vadd.f32 %v559, %v560
    %v562 = vrot.slane %v561, 2
    %v563 = vadd.f32 %v561, %v562
    %v564 = vrot.slane %v563, 1
    %v565 = vadd.f32 %v563, %v564
    %v566 = vsel %vm145, %v556, 0.0
    %v567 = vrot.slane %v566, 4
    %v568 = vadd.f32 %v566, %v567
    %v569 = vrot.slane %v568, 2
    %v570 = vadd.f32 %v568, %v569
    %v571 = vrot.slane %v570, 1
    %v572 = vadd.f32 %v570, %v571
    %v573 = vsel %vm145, %v557, 0.0
    %v574 = vrot.slane %v573, 4
    %v575 = vadd.f32 %v573, %v574
    %v576 = vrot.slane %v575, 2
    %v577 = vadd.f32 %v575, %v576
    %v578 = vrot.slane %v577, 1
    %v579 = vadd.f32 %v577, %v578
    %v580 = vsel %vm145, %v558, 0.0
    %v581 = vrot.slane %v580, 4
    %v582 = vadd.f32 %v580, %v581
    %v583 = vrot.slane %v582, 2
    %v584 = vadd.f32 %v582, %v583
    %v585 = vrot.slane %v584, 1
    %v586 = vadd.f32 %v584, %v585
    %v587 = vmul.f32 %v565, %v153
    %v588 = vmul.f32 %v572, %v153
    %v589 = vmul.f32 %v579, %v153
    %v590 = vmul.f32 %v586, %v153
    %v591 = vadd.f32 %v587, 1e-05
    %v592 = vadd.f32 %v588, 1e-05
    %v593 = vadd.f32 %v589, 1e-05
    %v594 = vadd.f32 %v590, 1e-05
    %v595 = vrsqrt.pop %v591
    %v596 = vrsqrt.pop %v592
    %v597 = vrsqrt.pop %v593
    %v598 = vrsqrt.pop %v594
    %v599 = vmul.f32 %v551, %v595
    %v600 = vmul.f32 %v552, %v596
    %v601 = vmul.f32 %v553, %v597
    %v602 = vmul.f32 %v554, %v598
    %v603 = vlaneseq
    %v604 = vshrl.u32 %v603, 7
    %v605 = vsub.s32 1, %v604
    %v606 = vrot.slane %v207, %v605
    %v607 = vlaneseq
    %v608 = vshrl.u32 %v607, 7
    %v609 = vsub.s32 1, %v608
    %v610 = vrot.slane %v208, %v609
    %v611 = vlaneseq
    %v612 = vshrl.u32 %v611, 7
    %v613 = vsub.s32 1, %v612
    %v614 = vrot.slane %v209, %v613
    %v615 = vlaneseq
    %v616 = vshrl.u32 %v615, 7
    %v617 = vsub.s32 1, %v616
    %v618 = vrot.slane %v210, %v617
    %v619 = vmul.f32 %v599, %v606
    %v620 = vmul.f32 %v600, %v610
    %v621 = vmul.f32 %v601, %v614
    %v622 = vmul.f32 %v602, %v618
    %v623 = vlaneseq
    %v624 = vshrl.u32 %v623, 7
    %v625 = vsub.s32 2, %v624
    %v626 = vrot.slane %v207, %v625
    %v627 = vlaneseq
    %v628 = vshrl.u32 %v627, 7
    %v629 = vsub.s32 2, %v628
    %v630 = vrot.slane %v208, %v629
    %v631 = vlaneseq
    %v632 = vshrl.u32 %v631, 7
    %v633 = vsub.s32 2, %v632
    %v634 = vrot.slane %v209, %v633
    %v635 = vlaneseq
    %v636 = vshrl.u32 %v635, 7
    %v637 = vsub.s32 2, %v636
    %v638 = vrot.slane %v210, %v637
    %v639 = vadd.f32 %v619, %v626
    %v640 = vadd.f32 %v620, %v630
    %v641 = vadd.f32 %v621, %v634
    %v642 = vadd.f32 %v622, %v638
    %vm643 = vcmp.ge.f32.partialorder %v639, 0.0
    %vm644 = vcmp.ge.f32.partialorder %v640, 0.0
    %vm645 = vcmp.ge.f32.partialorder %v641, 0.0
    %vm646 = vcmp.ge.f32.partialorder %v642, 0.0
    %v647 = vlaneseq
    %v648 = vshrl.u32 %v647, 7
    %v649 = vsub.s32 3, %v648
    %v650 = vrot.slane %v207, %v649
    %v651 = vlaneseq
    %v652 = vshrl.u32 %v651, 7
    %v653 = vsub.s32 3, %v652
    %v654 = vrot.slane %v208, %v653
    %v655 = vlaneseq
    %v656 = vshrl.u32 %v655, 7
    %v657 = vsub.s32 3, %v656
    %v658 = vrot.slane %v209, %v657
    %v659 = vlaneseq
    %v660 = vshrl.u32 %v659, 7
    %v661 = vsub.s32 3, %v660
    %v662 = vrot.slane %v210, %v661
    %v663 = vmul.f32 %v650, %v639
    %v664 = vmul.f32 %v654, %v640
    %v665 = vmul.f32 %v658, %v641
    %v666 = vmul.f32 %v662, %v642
    %v667 = vsel %vm643, %v639, %v663
    %v668 = vsel %vm644, %v640, %v664
    %v669 = vsel %vm645, %v641, %v665
    %v670 = vsel %vm646, %v642, %v666
    %v671 = vlaneseq
    %v672 = vshrl.u32 %v671, 7
    %v673 = vsub.s32 0, %v672
    %v674 = vrot.slane %v59, %v673
    %v675 = vmul.f32 %v667, %v674
    %v676 = vsel %vm145, %v675, 0.0
    %677 = vadd.xlane.f32.xlu0 %v676
    %v678 = vpop.xlane.xlu0 %677
    %v679 = vmul.f32 %v668, %v674
    %v680 = vsel %vm145, %v679, 0.0
    %681 = vadd.xlane.f32.xlu0 %v680
    %v682 = vpop.xlane.xlu0 %681
    %v683 = vmul.f32 %v669, %v674
    %v684 = vsel %vm145, %v683, 0.0
    %685 = vadd.xlane.f32.xlu0 %v684
    %v686 = vpop.xlane.xlu0 %685
    %v687 = vmul.f32 %v670, %v674
    %v688 = vsel %vm145, %v687, 0.0
    %689 = vadd.xlane.f32.xlu0 %v688
    %v690 = vpop.xlane.xlu0 %689
    %vm691 = vcmask 7168
    %v692 = vsel %vm691, %v678, %v682
    %vm693 = vcmask 15360
    %v694 = vsel %vm693, %v692, %v686
    %vm695 = vcmask 23552
    %v696 = vsel %vm695, %v694, %v690
    %v697 = vadd.f32 %v696, %v194
    %v698 = vxor.u32 %v697, 2147483648
    %v699 = vmul.f32 %v698, 1.442695
    %v700 = vpow.pop %v699
    %v701 = vadd.f32 %v700, 1.0
    %v702 = vrcp.pop %v701
    %v703 = vmul.f32 1.0, %v702
    %704 = vst.msk [vmem:[%s8] sm:$0xff] %vm67, %v703
    // Predicated region
    $region42: #{tpu_custom_call.1} parent=1 // pred_check
      _
    $region43: #{tpu_custom_call.1} parent=1 // pred_check_branch
      %706 = sbr.rel (0) target = $region45
    $region44: #{tpu_custom_call.1} parent=1 // pred_region
      _
    $region45: #{tpu_custom_call.1} parent=1 // pred_fallthru
      _
    // Predicated region
    $region46: #{tpu_custom_call.1} parent=1 // pred_check
      _
    $region47: #{tpu_custom_call.1} parent=1 // pred_check_branch
      %708 = sbr.rel (0) target = $region49
    $region48: #{tpu_custom_call.1} parent=1 // pred_region
      _
    $region49: #{tpu_custom_call.1} parent=1 // pred_fallthru
      _
    %709 = vsyncpa [#allocation4], 1
    %710 = vsyncpa [#allocation6], 1

</llo_original>
